<compile_context>
chip_gen: v7x
topology: tpu7x:2x2x1
jax: 0.10.0
libtpu: 0.0.40
codegen_flags: <defaults>
</compile_context>

<pallas_src>
import jax
import jax.numpy as jnp
from jax.experimental import pallas as pl
from jax.experimental.pallas import tpu as pltpu

_LANE = 128
_SINGLE_K_MAX = 4096          # padded K up to this -> single-k kernel
_VMEM_BUDGET = 40 * 1024 * 1024   # target working set (double-buffered tiles)
_VMEM_LIMIT = 48 * 1024 * 1024    # explicit scoped-VMEM limit (ok on v7x 64MiB)


def _cdiv(a, b):
    return (a + b - 1) // b


def _round_up(x, m):
    return ((x + m - 1) // m) * m


def _split(dim, granule, target, min_tiles=1):
    """Split `dim` into tiles of ~`target` (multiple of `granule`), with at
    least `min_tiles` tiles when the dim allows it.  Returns (tile, padded)."""
    n = max(min_tiles, _cdiv(dim, target))
    tile = _round_up(_cdiv(dim, n), granule)
    n = _cdiv(dim, tile)
    return tile, tile * n


# ---------------------------------------------------------------------------
# Pallas kernels
# ---------------------------------------------------------------------------
def _matmul_single_k_kernel(a_ref, x_ref, o_ref):
    # Whole contraction in one MXU dot; no accumulator RMW, no branches.
    o_ref[...] = jnp.dot(a_ref[...], x_ref[...],
                         preferred_element_type=jnp.float32).astype(o_ref.dtype)


def _matmul_multi_k_kernel(a_ref, x_ref, o_ref, acc_ref):
    @pl.when(pl.program_id(2) == 0)
    def _init():
        acc_ref[...] = jnp.zeros_like(acc_ref)

    acc_ref[...] += jnp.dot(a_ref[...], x_ref[...],
                            preferred_element_type=jnp.float32)

    @pl.when(pl.program_id(2) == pl.num_programs(2) - 1)
    def _store():
        o_ref[...] = acc_ref[...].astype(o_ref.dtype)


# ---------------------------------------------------------------------------
# Tiling plan
# ---------------------------------------------------------------------------
def _plan_spmm(R, K, F, compute_dtype, out_dtype=jnp.float32):
    isz = jnp.dtype(compute_dtype).itemsize
    osz = jnp.dtype(out_dtype).itemsize
    sub = max(8, 32 // isz)            # sublane granule: 8 f32, 16 bf16

    Kp0 = _round_up(K, _LANE)
    single_k = Kp0 <= _SINGLE_K_MAX
    if single_k:
        tk, Kp = Kp0, Kp0
    else:
        tk, Kp = _split(K, _LANE, 1024)

    # Rows: ~512-row tiles, >=2 tiles when possible (v7x dual TensorCore),
    # minimal padding (<= tile-1 extra rows).
    tm, Rp = _split(R, sub, 512, min_tiles=2)

    # Columns: single lane-dense tile (stream A once, X resident) when it
    # fits the VMEM budget, otherwise the fewest 128-multiple tiles that do.
    Fp0 = _round_up(F, _LANE)
    n_col = 1
    while True:
        tn, Fp = _split(F, _LANE, max(_LANE, _cdiv(Fp0, n_col)))
        if single_k:
            ws = 2 * tm * Kp * isz + 2 * Kp * tn * isz + 2 * tm * tn * osz
        else:
            ws = (2 * tm * tk * isz + 2 * tk * tn * isz
                  + 2 * tm * tn * osz + tm * tn * 4)
        if ws <= _VMEM_BUDGET or tn <= _LANE:
            break
        n_col += 1

    return dict(tm=tm, Rp=Rp, tk=tk, Kp=Kp, tn=tn, Fp=Fp, single_k=single_k)


# ---------------------------------------------------------------------------
# Padded SPMM launchers
# ---------------------------------------------------------------------------
def _spmm_single_k(a_pad, x_pad, tm, tn, out_dtype):
    Rp, Kp = a_pad.shape
    _, Fp = x_pad.shape
    return pl.pallas_call(
        _matmul_single_k_kernel,
        out_shape=jax.ShapeDtypeStruct((Rp, Fp), out_dtype),
        grid=(Rp // tm, Fp // tn),
        in_specs=[
            pl.BlockSpec((tm, Kp), lambda i, j: (i, 0)),   # A: streamed once
            pl.BlockSpec((Kp, tn), lambda i, j: (0, j)),   # X: VMEM resident
        ],
        out_specs=pl.BlockSpec((tm, tn), lambda i, j: (i, j)),
        compiler_params=pltpu.CompilerParams(
            dimension_semantics=("parallel", "parallel"),
            vmem_limit_bytes=_VMEM_LIMIT),
    )(a_pad, x_pad)


def _spmm_multi_k(a_pad, x_pad, tm, tn, tk, out_dtype):
    Rp, Kp = a_pad.shape
    _, Fp = x_pad.shape
    return pl.pallas_call(
        _matmul_multi_k_kernel,
        out_shape=jax.ShapeDtypeStruct((Rp, Fp), out_dtype),
        grid=(Rp // tm, Fp // tn, Kp // tk),
        in_specs=[
            pl.BlockSpec((tm, tk), lambda i, j, k: (i, k)),
            pl.BlockSpec((tk, tn), lambda i, j, k: (k, j)),
        ],
        out_specs=pl.BlockSpec((tm, tn), lambda i, j, k: (i, j)),
        scratch_shapes=[pltpu.VMEM((tm, tn), jnp.float32)],
        compiler_params=pltpu.CompilerParams(
            dimension_semantics=("parallel", "parallel", "arbitrary"),
            vmem_limit_bytes=_VMEM_LIMIT),
    )(a_pad, x_pad)


# ---------------------------------------------------------------------------
# ManyEdgeMPLayer.forward equivalent
# ---------------------------------------------------------------------------
def many_edge_mp_layer(X, edge_vals, edge_idx, real_edges=True,
                       compute_dtype=jnp.bfloat16):
    """
    X         : list of SO3 parts, each (2, N, 2l+1, tau) float32
    edge_vals : (nnz, E) float32  (real edge values)
    edge_idx  : (2, nnz) int32    (row, col) indices of the sparse adjacency
    Returns list of parts, each (2, N, 2l+1, E*tau) float32.
    """
    if not real_edges:
        # TODO(synk): complex edge values (real_edges=False) not implemented.
        raise NotImplementedError("real_edges=False not implemented")

    nnz, E = edge_vals.shape
    N = X[0].shape[1]

    # Fuse all SO3 parts: flatten each to (N, 2*(2l+1)*tau), concat on lanes.
    flats, metas = [], []
    for x in X:
        two, n, M, tau = x.shape
        assert n == N and two == 2
        flats.append(jnp.transpose(x, (1, 0, 2, 3)).reshape(N, two * M * tau))
        metas.append((two, M, tau))
    x_all = jnp.concatenate(flats, axis=1)            # (N, F_total)

    R, K, F = E * N, N, x_all.shape[1]
    plan = _plan_spmm(R, K, F, compute_dtype, jnp.float32)
    Rp, Kp, Fp = plan["Rp"], plan["Kp"], plan["Fp"]

    # Densify the E sparse matrices ONCE, directly in compute_dtype and at the
    # padded kernel shape (duplicate indices sum, matching torch.sparse).
    rows = (jnp.arange(E, dtype=jnp.int32)[:, None] * N
            + edge_idx[0].astype(jnp.int32)[None, :])                 # (E,nnz)
    cols = jnp.broadcast_to(edge_idx[1].astype(jnp.int32)[None, :], (E, nnz))
    vals = edge_vals.T.astype(compute_dtype)                          # (E,nnz)
    a_pad = jnp.zeros((Rp, Kp), compute_dtype).at[rows, cols].add(vals)

    x_pad = jnp.zeros((Kp, Fp), compute_dtype).at[:K, :F].set(
        x_all.astype(compute_dtype))

    if plan["single_k"]:
        y = _spmm_single_k(a_pad, x_pad, plan["tm"], plan["tn"], jnp.float32)
    else:
        y = _spmm_multi_k(a_pad, x_pad, plan["tm"], plan["tn"], plan["tk"],
                          jnp.float32)
    y = y[:R, :F].reshape(E, N, F)

    # Split back per part and reassemble to pygelib order (2, N, M, E*tau):
    # concat over edge types is the outer index of the channel axis, matching
    # torch.cat([spmm(e_0), ..., spmm(e_{E-1})], dim=-1).
    # TODO(synk): this per-part transpose is one extra HBM pass over the
    # output; folding it into the out_spec would force a non-lane-dense
    # (tau-minor) store layout, so it stays in XLA.
    out_parts = []
    off = 0
    for (two, M, tau) in metas:
        Fl = two * M * tau
        yp = y[:, :, off:off + Fl].reshape(E, N, two, M, tau)
        off += Fl
        yp = jnp.transpose(yp, (2, 1, 3, 0, 4)).reshape(two, N, M, E * tau)
        out_parts.append(yp)
    return out_parts


# ---------------------------------------------------------------------------
# Pure-JAX reference (mirrors torch.sparse.mm applied to each complex part)
# ---------------------------------------------------------------------------
def _reference(X, edge_vals, edge_idx):
    nnz, E = edge_vals.shape
    out = []
    for x in X:
        two, N, M, tau = x.shape
        A = jnp.zeros((E, N, N), jnp.float32).at[
            :, edge_idx[0], edge_idx[1]].add(edge_vals.T)
        parts = []
        for e in range(E):
            ye = jnp.einsum('nm,cmlt->cnlt', A[e], x)
            parts.append(ye)
        out.append(jnp.concatenate(parts, axis=-1))
    return out


if __name__ == "__main__":
    key = jax.random.PRNGKey(0)
    k1, k2, k3, k4, k5 = jax.random.split(key, 5)

    N = 16      # nodes
    tau = 4     # channels per SO3 part
    E = 3       # number of edge feature types
    nnz = 40    # number of (directed) edges

    # SO3VecArray with parts l=0 and l=1: shapes (2, N, 2l+1, tau)
    x_l0 = jax.random.normal(k1, (2, N, 1, tau), dtype=jnp.float32)
    x_l1 = jax.random.normal(k2, (2, N, 3, tau), dtype=jnp.float32)
    X = [x_l0, x_l1]

    edge_vals = jax.random.normal(k3, (nnz, E), dtype=jnp.float32)
    src = jax.random.randint(k4, (nnz,), 0, N, dtype=jnp.int32)
    dst = jax.random.randint(k5, (nnz,), 0, N, dtype=jnp.int32)
    edge_idx = jnp.stack([src, dst], axis=0)

    ref = _reference(X, edge_vals, edge_idx)

    # f32-input path: strict check.
    out_f32 = many_edge_mp_layer(X, edge_vals, edge_idx, real_edges=True,
                                 compute_dtype=jnp.float32)
    out_f32 = [jax.block_until_ready(o) for o in out_f32]
    for o, r in zip(out_f32, ref):
        assert o.shape == r.shape, (o.shape, r.shape)
        assert jnp.allclose(o, r, atol=1e-4, rtol=1e-4), "f32 mismatch vs reference"

    # bf16-input path (MXU-friendly, f32 accumulation): looser tolerance.
    out_bf16 = many_edge_mp_layer(X, edge_vals, edge_idx, real_edges=True,
                                  compute_dtype=jnp.bfloat16)
    out_bf16 = [jax.block_until_ready(o) for o in out_bf16]
    for o, r in zip(out_bf16, ref):
        assert o.shape == r.shape, (o.shape, r.shape)
        assert jnp.allclose(o, r, atol=5e-2, rtol=5e-2), "bf16 mismatch vs reference"

    print("KERNEL_OK")
</pallas_src>

<mosaic_0001>
module attributes {stable_mosaic.version = 11 : i64} {
  func.func @_matmul_single_k_kernel(%arg0: i32, %arg1: i32, %arg2: memref<24x128xf32, #tpu.memory_space<vmem>>, %arg3: memref<128x128xf32, #tpu.memory_space<vmem>>, %arg4: memref<24x128xf32, #tpu.memory_space<vmem>>) attributes {dimension_semantics = [#tpu.dimension_semantics<parallel>, #tpu.dimension_semantics<parallel>], iteration_bounds = array<i64: 2, 1>, scalar_prefetch = 0 : i64, scratch_operands = 0 : i64, tpu.core_type = #tpu.core_type<tc>, window_params = [{transform_indices = @transform_0, window_bounds = array<i64: 24, 128>}, {transform_indices = @transform_1, window_bounds = array<i64: 128, 128>}, {transform_indices = @transform_2, window_bounds = array<i64: 24, 128>}]} {
    %c0 = arith.constant 0 : index
    %c0_0 = arith.constant 0 : index
    %0 = vector.load %arg2[%c0, %c0_0] : memref<24x128xf32, #tpu.memory_space<vmem>>, vector<24x128xf32>
    %c0_1 = arith.constant 0 : index
    %c0_2 = arith.constant 0 : index
    %1 = vector.load %arg3[%c0_1, %c0_2] : memref<128x128xf32, #tpu.memory_space<vmem>>, vector<128x128xf32>
    %cst = arith.constant dense<0.000000e+00> : vector<24x128xf32>
    %2 = tpu.matmul %0, %1, %cst {dimension_numbers = #tpu.dot_dimension_numbers<[1], [0], [0], [1], [0, 0, 1, 1], [], []>} : vector<24x128xf32>, vector<128x128xf32>, vector<24x128xf32> -> vector<24x128xf32>
    %c0_3 = arith.constant 0 : index
    %c0_4 = arith.constant 0 : index
    %3 = vector.load %arg4[%c0_3, %c0_4] : memref<24x128xf32, #tpu.memory_space<vmem>>, vector<24x128xf32>
    tpu.vector_store %arg4[%c0_3, %c0_4], %2 {strides = array<i32>} : memref<24x128xf32, #tpu.memory_space<vmem>>, vector<24x128xf32>,
    return
  }
  func.func @transform_0(%arg0: i32, %arg1: i32) -> (i32, i32) {
    %c0_i32 = arith.constant 0 : i32
    %c0_i32_0 = arith.constant 0 : i32
    return %arg0, %c0_i32 : i32, i32
  }
  func.func @transform_1(%arg0: i32, %arg1: i32) -> (i32, i32) {
    %c0_i32 = arith.constant 0 : i32
    %c0_i32_0 = arith.constant 0 : i32
    return %c0_i32, %arg1 : i32, i32
  }
  func.func @transform_2(%arg0: i32, %arg1: i32) -> (i32, i32) {
    %c0_i32 = arith.constant 0 : i32
    return %arg0, %arg1 : i32, i32
  }
}

</mosaic_0001>

<llo_original>
// kernel: tpu_custom_call.1
$region0: #{tpu_custom_call.1}
  #allocation0 [shape = 'u32[]', space=smem, size = 0x4, offset = 0x4, fixed_abs, tag = 'smem constant byte address 0x4 - core index']
  #allocation1 [shape = 'u32[144,128]{1,0:T(1,128)}', space=vmem, size = 0x12000, scoped, tag = 'internal scratch']
  %s0 = inlined_call_operand.hbm [shape: f32[48,128], index: 0, kind: input, shape index: {}]
  %s1 = inlined_call_operand.hbm [shape: f32[128,128], index: 1, kind: input, shape index: {}]
  %s2 = inlined_call_operand.hbm [shape: f32[48,128], index: 2, kind: output, shape index: {}]
  %s3 = sld [smem:[#allocation0]]
  $region49: #{tpu_custom_call.1} parent=0
    _
  %s5 = ssub.s32 1, %s3
  %s6 = scalar_select 0, %s5, %s3
  $region1: #{tpu_custom_call.1} parent=0
    #allocation2 [shape = 'u8[24576]{0}', space=vmem, size = 0x6000, scoped, tag = 'input window, operand 0']
    #allocation3 [shape = 's32[2]{0}', space=sflag, size = 0x8, scoped, tag = 'scoped memory for tpu_custom_call.1']
    #allocation4 [shape = 's32[2]{0}', space=sflag, size = 0x8, scoped, tag = 'scoped memory for tpu_custom_call.1']
    #allocation5 [shape = 'u8[65536]{0}', space=vmem, size = 0x10000, scoped, tag = 'input window, operand 1, single buffered']
    #allocation6 [shape = 's32[1]{0}', space=sflag, size = 0x4, scoped, tag = 'scoped memory for tpu_custom_call.1']
    #allocation7 [shape = 'u8[24576]{0}', space=vmem, size = 0x6000, scoped, tag = 'output window, operand 0']
    %7 = vsyncpa [#allocation3], 0
    %s8 = scalar_lea.sflag [#allocation3], 1
    %9 = vsyncpa %s8, 0
    %10 = vsyncpa [#allocation6], 0
    %11 = vsyncpa [#allocation4], 0
    %s12 = scalar_lea.sflag [#allocation4], 1
    %13 = vsyncpa %s12, 0
    loop: start=0, step=1, limit=4
    $region2: #{tpu_custom_call.1} parent=1 // loop_pre_header
      _
    $region3: #{tpu_custom_call.1} parent=1 // loop_header
      %s15 = sphi 0, %s19
      %p16 = scmp.ge.s32.totalorder %s15, 4
      %s22 = sphi 0, %s34
      %s23 = sphi 0, %s30
      %s24 = sphi 0, %s22
      %s25 = sphi 0, %s23
      %s26 = sphi 0, %s24
      %s27 = sphi 0, %s25
      %s37 = sphi 0, %s39
      %s40 = sphi 0, %s37
      %s41 = sphi 0, %s40
      %s57 = sphi 0, %s41
      %s63 = sphi 0, %s65
      %s66 = sphi 0, %s63
      %s67 = sphi 0, %s66
      %s83 = sphi 0, %s67
      %s91 = sphi 0, %s93
      %s94 = sphi 0, %s91
      %s95 = sphi 0, %s94
      %s111 = sphi 0, %s95
    $region4: #{tpu_custom_call.1} parent=1 // loop_header_branch
      %18 = sbr.rel (%p16) target = $region8
    $region5: #{tpu_custom_call.1} parent=1 // loop_body
      %s20 = ssub.s32 %s15, 1
      %s21 = ssub.s32 %s15, 2
      %s28 = sadd.s32 1, %s23
      %p29 = scmp.ge.s32.totalorder %s28, 1
      %s30 = scalar_select %p29, 0, %s28
      %s31 = sadd.s32 1, %s22
      %s32 = scalar_select %p29, %s31, %s22
      %p33 = scmp.ge.s32.totalorder %s32, 2
      %s34 = scalar_select %p33, 0, %s32
      %s35 = ssub.s32 %s22, %s34
      %p36 = scmp.eq.s32.totalorder %s35, 0
      %s38 = sadd.s32 %s37, 1
      %s39 = scalar_select %p36, %s37, %s38
      %p42 = pneg %p36
      %p43 = scmp.eq.s32.totalorder %s15, 1
      %p44 = por %p42, %p43
      %p45 = scmp.ne.s32.totalorder %s37, %s40
      %p46 = scmp.eq.s32.totalorder %s15, 0
      %p47 = por %p45, %p46
      %p48 = scmp.ne.s32.totalorder %s37, %s40
      %p49 = scmp.eq.s32.totalorder %s20, 1
      %p50 = por %p48, %p49
      %p51 = scmp.ne.s32.totalorder %s40, %s41
      %p52 = scmp.eq.s32.totalorder %s20, 0
      %p53 = por %p51, %p52
      %p54 = scmp.ne.s32.totalorder %s40, %s41
      %p55 = scmp.eq.s32.totalorder %s21, 1
      %p56 = por %p54, %p55
      %p58 = scmp.ne.s32.totalorder %s41, %s57
      %p59 = scmp.eq.s32.totalorder %s21, 0
      %p60 = por %p58, %p59
      %s61 = ssub.s32 %s23, %s30
      %p62 = scmp.eq.s32.totalorder %s61, 0
      %s64 = sadd.s32 %s63, 1
      %s65 = scalar_select %p62, %s63, %s64
      %p68 = pneg %p62
      %p69 = scmp.eq.s32.totalorder %s15, 1
      %p70 = por %p68, %p69
      %p71 = scmp.ne.s32.totalorder %s63, %s66
      %p72 = scmp.eq.s32.totalorder %s15, 0
      %p73 = por %p71, %p72
      %p74 = scmp.ne.s32.totalorder %s63, %s66
      %p75 = scmp.eq.s32.totalorder %s20, 1
      %p76 = por %p74, %p75
      %p77 = scmp.ne.s32.totalorder %s66, %s67
      %p78 = scmp.eq.s32.totalorder %s20, 0
      %p79 = por %p77, %p78
      %p80 = scmp.ne.s32.totalorder %s66, %s67
      %p81 = scmp.eq.s32.totalorder %s21, 1
      %p82 = por %p80, %p81
      %p84 = scmp.ne.s32.totalorder %s67, %s83
      %p85 = scmp.eq.s32.totalorder %s21, 0
      %p86 = por %p84, %p85
      %s87 = ssub.s32 %s22, %s34
      %s88 = ssub.s32 %s23, %s30
      %s89 = sor.u32 %s87, %s88
      %p90 = scmp.eq.s32.totalorder %s89, 0
      %s92 = sadd.s32 %s91, 1
      %s93 = scalar_select %p90, %s91, %s92
      %p96 = pneg %p90
      %p97 = scmp.eq.s32.totalorder %s15, 1
      %p98 = por %p96, %p97
      %p99 = scmp.ne.s32.totalorder %s91, %s94
      %p100 = scmp.eq.s32.totalorder %s15, 0
      %p101 = por %p99, %p100
      %p102 = scmp.ne.s32.totalorder %s91, %s94
      %p103 = scmp.eq.s32.totalorder %s20, 1
      %p104 = por %p102, %p103
      %p105 = scmp.ne.s32.totalorder %s94, %s95
      %p106 = scmp.eq.s32.totalorder %s20, 0
      %p107 = por %p105, %p106
      %p108 = scmp.ne.s32.totalorder %s94, %s95
      %p109 = scmp.eq.s32.totalorder %s21, 1
      %p110 = por %p108, %p109
      %p112 = scmp.ne.s32.totalorder %s95, %s111
      %p113 = scmp.eq.s32.totalorder %s21, 0
      %p114 = por %p112, %p113
      %p115 = scmp.le.s32.totalorder 1, %s15
      %p116 = scmp.lt.s32.totalorder %s15, 3
      %p117 = pnand %p115, %p116
      %p118 = pneg %p117
      // Predicated region
      $region9: #{tpu_custom_call.1} parent=5 // pred_check
        _
      $region10: #{tpu_custom_call.1} parent=5 // pred_check_branch
        %120 = sbr.rel (%p117) target = $region12
      $region11: #{tpu_custom_call.1} parent=5 // pred_region
        %s121 = ssub.s32 %s15, 1
        // Predicated region
        $region13: #{tpu_custom_call.1} parent=11 // pred_check
          %p122 = pneg %p79
        $region14: #{tpu_custom_call.1} parent=11 // pred_check_branch
          %124 = sbr.rel (%p122) target = $region16
        $region15: #{tpu_custom_call.1} parent=11 // pred_region
          %s126 = ssub.s32 2048, 2048
          %127 = vsyncadd [#allocation6], %s126
          %s128 = smul.addr %s25, 128
          %s129 = scalar_lea.hbm %s1, %s128
          %s130 = sshll.u32 [#allocation5], 4
          %s131 = int_to_ptr.vmem [resolvable:$true] %s130
          %136 = dma.hbm_to_vmem [thread:$0]  %s129, 2048, %s131, [#allocation6], 128, 128, 8
        $region16: #{tpu_custom_call.1} parent=11 // pred_fallthru
          _
      $region12: #{tpu_custom_call.1} parent=5 // pred_fallthru
        _
      %p137 = scmp.lt.s32.totalorder %s15, 2
      // Predicated region
      $region17: #{tpu_custom_call.1} parent=5 // pred_check
        %p138 = pneg %p137
      $region18: #{tpu_custom_call.1} parent=5 // pred_check_branch
        %140 = sbr.rel (%p138) target = $region20
      $region19: #{tpu_custom_call.1} parent=5 // pred_region
        // Predicated region
        $region21: #{tpu_custom_call.1} parent=19 // pred_check
          %p141 = pneg %p47
        $region22: #{tpu_custom_call.1} parent=19 // pred_check_branch
          %143 = sbr.rel (%p141) target = $region24
        $region23: #{tpu_custom_call.1} parent=19 // pred_region
          %s144 = sand.u32 %s37, 1
          %s145 = scalar_lea.sflag [#allocation3], %s144
          %s146 = sand.u32 %s37, 1
          %s147 = smul.addr %s146, 24
          %s148 = scalar_lea.vmem [#allocation2], %s147
          %s149 = smul.u32 3, %s22
          %s151 = ssub.s32 384, 384
          %152 = vsyncadd %s145, %s151
          %s153 = smul.addr %s149, 128
          %s154 = scalar_lea.hbm %s0, %s153
          %s155 = sshll.u32 %s148, 4
          %s156 = int_to_ptr.vmem [resolvable:$true] %s155
          %161 = dma.hbm_to_vmem [thread:$0]  %s154, 384, %s156, %s145, 128, 128, 8
        $region24: #{tpu_custom_call.1} parent=19 // pred_fallthru
          _
      $region20: #{tpu_custom_call.1} parent=5 // pred_fallthru
        _
      %p162 = scmp.le.s32.totalorder 1, %s15
      %p163 = scmp.lt.s32.totalorder %s15, 3
      %p164 = pnand %p162, %p163
      %p165 = pneg %p164
      // Predicated region
      $region25: #{tpu_custom_call.1} parent=5 // pred_check
        _
      $region26: #{tpu_custom_call.1} parent=5 // pred_check_branch
        %167 = sbr.rel (%p164) target = $region28
      $region27: #{tpu_custom_call.1} parent=5 // pred_region
        %s168 = ssub.s32 %s15, 1
        %s169 = sand.u32 %s40, 1
        %s170 = scalar_lea.sflag [#allocation3], %s169
        %s171 = sand.u32 %s40, 1
        %s172 = smul.addr %s171, 24
        %s173 = scalar_lea.vmem [#allocation2], %s172
        // Predicated region
        $region29: #{tpu_custom_call.1} parent=27 // pred_check
          %p174 = pneg %p53
        $region30: #{tpu_custom_call.1} parent=27 // pred_check_branch
          %176 = sbr.rel (%p174) target = $region32
        $region31: #{tpu_custom_call.1} parent=27 // pred_region
          %177 = dma.done %s170, 384
        $region32: #{tpu_custom_call.1} parent=27 // pred_fallthru
          _
        // Predicated region
        $region33: #{tpu_custom_call.1} parent=27 // pred_check
          %p178 = pneg %p79
        $region34: #{tpu_custom_call.1} parent=27 // pred_check_branch
          %180 = sbr.rel (%p178) target = $region36
        $region35: #{tpu_custom_call.1} parent=27 // pred_region
          %181 = dma.done [#allocation6], 2048
        $region36: #{tpu_custom_call.1} parent=27 // pred_fallthru
          _
        %s182 = sand.u32 %s40, 1
        %s183 = scalar_lea.sflag [#allocation3], %s182
        %s184 = sand.u32 %s40, 1
        %s185 = smul.addr %s184, 24
        %s186 = scalar_lea.vmem [#allocation2], %s185
        %p187 = pneg %p53
        %p188 = pneg %p50
        %p189 = pneg %p79
        %p190 = pneg %p76
        %p191 = pneg %p107
        %p192 = pneg %p104
        %s193 = sand.u32 %s94, 1
        %s194 = scalar_lea.sflag [#allocation4], %s193
        %s195 = sand.u32 %s94, 1
        %s196 = smul.addr %s195, 24
        %s197 = scalar_lea.vmem [#allocation7], %s196
        %s198 = smul.u32 3, %s24
        %s199 = smul.u32 3, %s24
        %v200 = vld [vmem:[%s173] sm:$0xff]
        %v201 = vld [vmem:[%s173 + $0x8] sm:$0xff]
        %v202 = vld [vmem:[%s173 + $0x10] sm:$0xff]
        %v203 = vld [vmem:[#allocation5] sm:$0xff]
        %v204 = vld [vmem:[#allocation5 + $0x8] sm:$0xff]
        %v205 = vld [vmem:[#allocation5 + $0x10] sm:$0xff]
        %v206 = vld [vmem:[#allocation5 + $0x18] sm:$0xff]
        %v207 = vld [vmem:[#allocation5 + $0x20] sm:$0xff]
        %v208 = vld [vmem:[#allocation5 + $0x28] sm:$0xff]
        %v209 = vld [vmem:[#allocation5 + $0x30] sm:$0xff]
        %v210 = vld [vmem:[#allocation5 + $0x38] sm:$0xff]
        %v211 = vld [vmem:[#allocation5 + $0x40] sm:$0xff]
        %v212 = vld [vmem:[#allocation5 + $0x48] sm:$0xff]
        %v213 = vld [vmem:[#allocation5 + $0x50] sm:$0xff]
        %v214 = vld [vmem:[#allocation5 + $0x58] sm:$0xff]
        %v215 = vld [vmem:[#allocation5 + $0x60] sm:$0xff]
        %v216 = vld [vmem:[#allocation5 + $0x68] sm:$0xff]
        %v217 = vld [vmem:[#allocation5 + $0x70] sm:$0xff]
        %v218 = vld [vmem:[#allocation5 + $0x78] sm:$0xff]
        %219 = vmatprep.subr.mxu0 0.0
        %220 = vmatpush1.msra.mxu0 %v203
        %221 = vmatprep.subr.mxu0 0.0
        %222 = vmatpush1.msra.mxu0 %v204
        %223 = vmatprep.subr.mxu0 0.0
        %224 = vmatpush1.msra.mxu0 %v205
        %225 = vmatprep.subr.mxu0 0.0
        %226 = vmatpush1.msra.mxu0 %v206
        %227 = vmatprep.subr.mxu0 0.0
        %228 = vmatpush1.msra.mxu0 %v207
        %229 = vmatprep.subr.mxu0 0.0
        %230 = vmatpush1.msra.mxu0 %v208
        %231 = vmatprep.subr.mxu0 0.0
        %232 = vmatpush1.msra.mxu0 %v209
        %233 = vmatprep.subr.mxu0 0.0
        %234 = vmatpush1.msra.mxu0 %v210
        %235 = vmatprep.subr.mxu0 0.0
        %236 = vmatpush1.msra.mxu0 %v211
        %237 = vmatprep.subr.mxu0 0.0
        %238 = vmatpush1.msra.mxu0 %v212
        %239 = vmatprep.subr.mxu0 0.0
        %240 = vmatpush1.msra.mxu0 %v213
        %241 = vmatprep.subr.mxu0 0.0
        %242 = vmatpush1.msra.mxu0 %v214
        %243 = vmatprep.subr.mxu0 0.0
        %244 = vmatpush1.msra.mxu0 %v215
        %245 = vmatprep.subr.mxu0 0.0
        %246 = vmatpush1.msra.mxu0 %v216
        %247 = vmatprep.subr.mxu0 0.0
        %248 = vmatpush1.msra.mxu0 %v217
        %249 = vmatprep.subr.mxu0 0.0
        %250 = vmatpush1.msra.mxu0 %v218
        %251 = vmatprep.subr.mxu0 0.0
        %252 = vmatpush1.msra.mxu0 0.0
        %253 = vmatprep.subr.mxu0 0.0
        %254 = vmatpush1.msra.mxu0 0.0
        %255 = vmatprep.subr.mxu0 0.0
        %256 = vmatpush1.msra.mxu0 0.0
        %257 = vmatprep.subr.mxu0 0.0
        %258 = vmatpush1.msra.mxu0 0.0
        %259 = vmatprep.subr.mxu0 0.0
        %260 = vmatpush1.msra.mxu0 0.0
        %261 = vmatprep.subr.mxu0 0.0
        %262 = vmatpush1.msra.mxu0 0.0
        %263 = vmatprep.subr.mxu0 0.0
        %264 = vmatpush1.msra.mxu0 0.0
        %265 = vmatprep.subr.mxu0 0.0
        %266 = vmatpush1.msra.mxu0 0.0
        %267 = vmatprep.subr.mxu0 0.0
        %268 = vmatpush1.msra.mxu0 0.0
        %269 = vmatprep.subr.mxu0 0.0
        %270 = vmatpush1.msra.mxu0 0.0
        %271 = vmatprep.subr.mxu0 0.0
        %272 = vmatpush1.msra.mxu0 0.0
        %273 = vmatprep.subr.mxu0 0.0
        %274 = vmatpush1.msra.mxu0 0.0
        %275 = vmatprep.subr.mxu0 0.0
        %276 = vmatpush1.msra.mxu0 0.0
        %277 = vmatprep.subr.mxu0 0.0
        %278 = vmatpush1.msra.mxu0 0.0
        %279 = vmatprep.subr.mxu0 0.0
        %280 = vmatpush1.msra.mxu0 0.0
        %281 = vmatprep.subr.mxu0 0.0
        %282 = vmatpush1.msra.mxu0 0.0
        %283 = vmatprep.mubr.f32.mxu0 0.0
        %284 = vmatmul.mubr.f32.gmra.mrb[0].mxu0 %v200
        %v285 = vpop.f32.mrb[0].mxu0
        %v286 = vadd.f32 0.0, %v285
        %v287 = vpop.f32.mrb[0].mxu0
        %288 = vmatprep.mubr.f32.mxu0 0.0
        %289 = vmatmul.mubr.f32.gmra.mrb[0].mxu0 %v201
        %v290 = vpop.f32.mrb[0].mxu0
        %v291 = vadd.f32 0.0, %v290
        %v292 = vpop.f32.mrb[0].mxu0
        %293 = vmatprep.mubr.f32.mxu0 0.0
        %294 = vmatmul.mubr.f32.gmra.mrb[0].mxu0 %v202
        %v295 = vpop.f32.mrb[0].mxu0
        %v296 = vadd.f32 0.0, %v295
        %v297 = vpop.f32.mrb[0].mxu0
        %298 = vdwg.mxu0
        %299 = vst [vmem:[%s197] sm:$0xff] %v286
        %300 = vst [vmem:[%s197 + $0x8] sm:$0xff] %v291
        %301 = vst [vmem:[%s197 + $0x10] sm:$0xff] %v296
        %s302 = sand.u32 %s94, 1
        %s303 = scalar_lea.sflag [#allocation4], %s302
        %s304 = sand.u32 %s94, 1
        %s305 = smul.addr %s304, 24
        %s306 = scalar_lea.vmem [#allocation7], %s305
        // Predicated region
        $region37: #{tpu_custom_call.1} parent=27 // pred_check
          %p307 = pneg %p104
        $region38: #{tpu_custom_call.1} parent=27 // pred_check_branch
          %309 = sbr.rel (%p307) target = $region40
        $region39: #{tpu_custom_call.1} parent=27 // pred_region
          %s310 = smul.u32 3, %s24
          %s312 = ssub.s32 384, 384
          %313 = vsyncadd %s303, %s312
          %s314 = sadd.s32 %s25, %s310
          %s315 = smul.addr %s314, 128
          %s316 = scalar_lea.hbm %s2, %s315
          %s317 = sshll.u32 %s306, 4
          %s318 = int_to_ptr.vmem [resolvable:$true] %s317
          %323 = dma.vmem_to_hbm [thread:$0]  %s318, 384, %s316, %s303, 128, 128, 8
        $region40: #{tpu_custom_call.1} parent=27 // pred_fallthru
          _
      $region28: #{tpu_custom_call.1} parent=5 // pred_fallthru
        _
      %p324 = scmp.le.s32.totalorder 2, %s15
      // Predicated region
      $region41: #{tpu_custom_call.1} parent=5 // pred_check
        %p325 = pneg %p324
      $region42: #{tpu_custom_call.1} parent=5 // pred_check_branch
        %327 = sbr.rel (%p325) target = $region44
      $region43: #{tpu_custom_call.1} parent=5 // pred_region
        %s328 = ssub.s32 %s15, 2
        // Predicated region
        $region45: #{tpu_custom_call.1} parent=43 // pred_check
          %p329 = pneg %p110
        $region46: #{tpu_custom_call.1} parent=43 // pred_check_branch
          %331 = sbr.rel (%p329) target = $region48
        $region47: #{tpu_custom_call.1} parent=43 // pred_region
          %s332 = sand.u32 %s95, 1
          %s333 = scalar_lea.sflag [#allocation4], %s332
          %s334 = sand.u32 %s95, 1
          %s335 = smul.addr %s334, 24
          %s336 = scalar_lea.vmem [#allocation7], %s335
          %337 = dma.done %s333, 384
        $region48: #{tpu_custom_call.1} parent=43 // pred_fallthru
          _
      $region44: #{tpu_custom_call.1} parent=5 // pred_fallthru
        _
    $region6: #{tpu_custom_call.1} parent=1 // loop_footer
      %s19 = sadd.s32 1, %s15
    $region7: #{tpu_custom_call.1} parent=1 // loop_footer_branch
      %14 = sbr.rel target = $region3
    $region8: #{tpu_custom_call.1} parent=1 // loop_exit
      _
    %338 = vsyncpa [#allocation3], 1
    %s339 = scalar_lea.sflag [#allocation3], 1
    %340 = vsyncpa %s339, 1
    %341 = vsyncpa [#allocation6], 1
    %342 = vsyncpa [#allocation4], 1
    %s343 = scalar_lea.sflag [#allocation4], 1
    %344 = vsyncpa %s343, 1

</llo_original>
